<compile_context>
chip_gen: v6e
topology: v6e:2x2x1
jax: 0.10.0
libtpu: 0.0.40
codegen_flags: <defaults>
</compile_context>

<pallas_src>
import functools

import jax
import jax.numpy as jnp
import numpy as np
from jax.experimental import pallas as pl
from jax.experimental.pallas import tpu as pltpu


# -----------------------------------------------------------------------------
# Kernel
# -----------------------------------------------------------------------------
def leak_cls_dis_kernel(
    x_ref,                       # (TILE_B, input_n)
    w1_ref, t1_ref,              # (input_n, h1), (1, h1)   [BN1 scale folded into w1]
    w2_ref, t2_ref,              # (h1, h2),     (1, h2)    [BN2 scale folded into w2]
    w3_ref, b3_ref,              # (h2, 2*h3),   (1, 2*h3)  [cls|dis branches fused]
    wo_ref, bo_ref,              # (2*h3, 2),    (1, 2)     [block-diagonal out_c/out_r]
    out_ref,                     # (TILE_B, 2)  -> column 0 = cls, column 1 = dis
):
    x = x_ref[...]

    # Layer 1: linear (BN scale pre-folded) + shift + relu
    h1 = jnp.dot(x, w1_ref[...], preferred_element_type=jnp.float32)
    h1 = jnp.maximum(h1 + t1_ref[...], 0.0)

    # Layer 2: linear (BN scale pre-folded) + shift + relu
    h2 = jnp.dot(h1, w2_ref[...], preferred_element_type=jnp.float32)
    h2 = jnp.maximum(h2 + t2_ref[...], 0.0)

    # Fused cls|dis hidden layer + relu
    h3 = jnp.dot(h2, w3_ref[...], preferred_element_type=jnp.float32)
    h3 = jnp.maximum(h3 + b3_ref[...], 0.0)

    # Fused block-diagonal output projection -> (TILE_B, 2)
    out_ref[...] = (
        jnp.dot(h3, wo_ref[...], preferred_element_type=jnp.float32) + bo_ref[...]
    )


# -----------------------------------------------------------------------------
# Wrapper
# -----------------------------------------------------------------------------
def _round_up(n, m):
    return ((n + m - 1) // m) * m


@functools.partial(jax.jit, static_argnames=("tile_b",))
def leak_cls_dis_forward(x, fused_params, tile_b=512):
    """Run the fused Pallas kernel. Returns (cls_out, dis_out), each (B, 1)."""
    w1, t1, w2, t2, w3, b3, wo, bo = fused_params
    B, d_in = x.shape

    # Tile the batch; pad B up to a multiple of the tile (multiple of 8 rows).
    tb = min(tile_b, _round_up(B, 8))
    b_pad = _round_up(B, tb)
    if b_pad != B:
        x = jnp.pad(x, ((0, b_pad - B), (0, 0)))
    grid = (b_pad // tb,)

    row_map = lambda i: (i, 0)      # x / output tiles walk the batch axis
    const_map = lambda i: (0, 0)    # weights stay resident across grid steps

    weight_args = (w1, t1, w2, t2, w3, b3, wo, bo)
    weight_specs = [pl.BlockSpec(p.shape, const_map) for p in weight_args]

    h1n, h2n, h3x2, n_out = w1.shape[1], w2.shape[1], w3.shape[1], wo.shape[1]
    flops = 2 * b_pad * (d_in * h1n + h1n * h2n + h2n * h3x2 + h3x2 * n_out)
    bytes_accessed = 4 * (
        b_pad * d_in + sum(int(p.size) for p in weight_args) + b_pad * n_out
    )

    out = pl.pallas_call(
        leak_cls_dis_kernel,
        out_shape=jax.ShapeDtypeStruct((b_pad, n_out), jnp.float32),
        grid=grid,
        in_specs=[pl.BlockSpec((tb, d_in), row_map)] + weight_specs,
        out_specs=pl.BlockSpec((tb, n_out), row_map),
        compiler_params=pltpu.CompilerParams(
            dimension_semantics=("parallel",),
        ),
        cost_estimate=pl.CostEstimate(
            flops=flops, transcendentals=0, bytes_accessed=bytes_accessed
        ),
    )(x, *weight_args)

    cls_out = out[:B, 0:1]
    dis_out = out[:B, 1:2]
    return cls_out, dis_out


# -----------------------------------------------------------------------------
# Parameter construction (PyTorch layout) + folding/fusion for the kernel
# -----------------------------------------------------------------------------
def make_raw_params(key, input_n=256, base_n=32, scaling=(4, 2, 1)):
    """Synthetic parameters in PyTorch layout (Linear.weight is (out, in))."""
    h1 = scaling[0] * base_n   # 128
    h2 = scaling[1] * base_n   # 64
    h3 = scaling[2] * base_n   # 32
    f32 = jnp.float32
    ks = jax.random.split(key, 18)

    def nrm(k, shape, s=0.05):
        return jax.random.normal(k, shape, f32) * s

    raw = dict(
        w1=nrm(ks[0], (h1, input_n)),
        w2=nrm(ks[1], (h2, h1)),
        bn1_gamma=1.0 + 0.1 * jax.random.normal(ks[2], (h1,), f32),
        bn1_beta=nrm(ks[3], (h1,)),
        bn1_mean=nrm(ks[4], (h1,)),
        bn1_var=1.0 + 0.1 * jax.random.uniform(ks[5], (h1,), f32),
        bn2_gamma=1.0 + 0.1 * jax.random.normal(ks[6], (h2,), f32),
        bn2_beta=nrm(ks[7], (h2,)),
        bn2_mean=nrm(ks[8], (h2,)),
        bn2_var=1.0 + 0.1 * jax.random.uniform(ks[9], (h2,), f32),
        w3c=nrm(ks[10], (h3, h2)), b3c=nrm(ks[11], (h3,)),
        w3r=nrm(ks[12], (h3, h2)), b3r=nrm(ks[13], (h3,)),
        woc=nrm(ks[14], (1, h3)), boc=nrm(ks[15], (1,)),
        wor=nrm(ks[16], (1, h3)), bor=nrm(ks[17], (1,)),
    )
    return raw


def prepare_fused_params(raw, eps=1e-5):
    """Fold eval-mode BN into weights, fuse cls/dis branches, transpose to (in, out)."""
    s1 = raw["bn1_gamma"] / jnp.sqrt(raw["bn1_var"] + eps)
    t1 = raw["bn1_beta"] - raw["bn1_mean"] * s1
    s2 = raw["bn2_gamma"] / jnp.sqrt(raw["bn2_var"] + eps)
    t2 = raw["bn2_beta"] - raw["bn2_mean"] * s2

    w1 = raw["w1"].T * s1[None, :]                 # (input_n, h1), BN1 scale folded
    w2 = raw["w2"].T * s2[None, :]                 # (h1, h2),      BN2 scale folded

    # Fuse ln_3_c | ln_3_r along the output dimension.
    w3 = jnp.concatenate([raw["w3c"].T, raw["w3r"].T], axis=1)       # (h2, 2*h3)
    b3 = jnp.concatenate([raw["b3c"], raw["b3r"]])[None, :]          # (1, 2*h3)

    # Block-diagonal out_c / out_r -> single (2*h3, 2) projection.
    h3n = raw["w3c"].shape[0]
    wo = jnp.zeros((2 * h3n, 2), jnp.float32)
    wo = wo.at[:h3n, 0:1].set(raw["woc"].T)
    wo = wo.at[h3n:, 1:2].set(raw["wor"].T)
    bo = jnp.concatenate([raw["boc"], raw["bor"]])[None, :]          # (1, 2)

    return (w1, t1[None, :], w2, t2[None, :], w3, b3, wo, bo)


def reference_forward(x, raw, eps=1e-5):
    """Plain-JAX re-implementation of the PyTorch forward (eval-mode BN)."""
    hp = jax.lax.Precision.HIGHEST

    h = jnp.dot(x, raw["w1"].T, precision=hp)
    h = (h - raw["bn1_mean"]) / jnp.sqrt(raw["bn1_var"] + eps) * raw["bn1_gamma"] + raw["bn1_beta"]
    h = jnp.maximum(h, 0.0)

    h = jnp.dot(h, raw["w2"].T, precision=hp)
    h = (h - raw["bn2_mean"]) / jnp.sqrt(raw["bn2_var"] + eps) * raw["bn2_gamma"] + raw["bn2_beta"]
    h = jnp.maximum(h, 0.0)

    hc = jnp.maximum(jnp.dot(h, raw["w3c"].T, precision=hp) + raw["b3c"], 0.0)
    hr = jnp.maximum(jnp.dot(h, raw["w3r"].T, precision=hp) + raw["b3r"], 0.0)
    cls_out = jnp.dot(hc, raw["woc"].T, precision=hp) + raw["boc"]
    dis_out = jnp.dot(hr, raw["wor"].T, precision=hp) + raw["bor"]
    return cls_out, dis_out


# -----------------------------------------------------------------------------
# Self-test
# -----------------------------------------------------------------------------
if __name__ == "__main__":
    key = jax.random.PRNGKey(0)
    k_x, k_p = jax.random.split(key)

    B = 20                       # small batch; not a multiple of the tile -> exercises padding
    input_n = 256
    x = jax.random.normal(k_x, (B, input_n), jnp.float32)

    raw = make_raw_params(k_p, input_n=input_n, base_n=32, scaling=(4, 2, 1))
    fused = prepare_fused_params(raw)

    # tile_b=8 -> 3 grid steps + 4 padded rows; exercises the batch pipeline.
    cls_out, dis_out = leak_cls_dis_forward(x, fused, tile_b=8)
    jax.block_until_ready((cls_out, dis_out))

    cls_ref, dis_ref = reference_forward(x, raw)
    assert cls_out.shape == (B, 1) and dis_out.shape == (B, 1)
    np.testing.assert_allclose(np.asarray(cls_out), np.asarray(cls_ref), rtol=1e-4, atol=1e-4)
    np.testing.assert_allclose(np.asarray(dis_out), np.asarray(dis_ref), rtol=1e-4, atol=1e-4)

    print("KERNEL_OK")
</pallas_src>

<mosaic_0001>
module attributes {stable_mosaic.version = 11 : i64} {
  func.func @leak_cls_dis_kernel(%arg0: i32, %arg1: memref<8x256xf32, #tpu.memory_space<vmem>>, %arg2: memref<256x128xf32, #tpu.memory_space<vmem>>, %arg3: memref<1x128xf32, #tpu.memory_space<vmem>>, %arg4: memref<128x64xf32, #tpu.memory_space<vmem>>, %arg5: memref<1x64xf32, #tpu.memory_space<vmem>>, %arg6: memref<64x64xf32, #tpu.memory_space<vmem>>, %arg7: memref<1x64xf32, #tpu.memory_space<vmem>>, %arg8: memref<64x2xf32, #tpu.memory_space<vmem>>, %arg9: memref<1x2xf32, #tpu.memory_space<vmem>>, %arg10: memref<8x2xf32, #tpu.memory_space<vmem>>) attributes {dimension_semantics = [#tpu.dimension_semantics<parallel>], iteration_bounds = array<i64: 3>, scalar_prefetch = 0 : i64, scratch_operands = 0 : i64, tpu.core_type = #tpu.core_type<tc>, window_params = [{transform_indices = @transform_0, window_bounds = array<i64: 8, 256>}, {pipeline_mode = #tpu.pipeline_mode<synchronous>, transform_indices = @transform_1, window_bounds = array<i64: 256, 128>}, {pipeline_mode = #tpu.pipeline_mode<synchronous>, transform_indices = @transform_2, window_bounds = array<i64: 1, 128>}, {pipeline_mode = #tpu.pipeline_mode<synchronous>, transform_indices = @transform_3, window_bounds = array<i64: 128, 64>}, {pipeline_mode = #tpu.pipeline_mode<synchronous>, transform_indices = @transform_4, window_bounds = array<i64: 1, 64>}, {pipeline_mode = #tpu.pipeline_mode<synchronous>, transform_indices = @transform_5, window_bounds = array<i64: 64, 64>}, {pipeline_mode = #tpu.pipeline_mode<synchronous>, transform_indices = @transform_6, window_bounds = array<i64: 1, 64>}, {pipeline_mode = #tpu.pipeline_mode<synchronous>, transform_indices = @transform_7, window_bounds = array<i64: 64, 2>}, {pipeline_mode = #tpu.pipeline_mode<synchronous>, transform_indices = @transform_8, window_bounds = array<i64: 1, 2>}, {transform_indices = @transform_9, window_bounds = array<i64: 8, 2>}]} {
    %c0 = arith.constant 0 : index
    %c0_0 = arith.constant 0 : index
    %0 = vector.load %arg1[%c0, %c0_0] : memref<8x256xf32, #tpu.memory_space<vmem>>, vector<8x256xf32>
    %c0_1 = arith.constant 0 : index
    %c0_2 = arith.constant 0 : index
    %1 = vector.load %arg2[%c0_1, %c0_2] : memref<256x128xf32, #tpu.memory_space<vmem>>, vector<256x128xf32>
    %cst = arith.constant dense<0.000000e+00> : vector<8x128xf32>
    %2 = tpu.matmul %0, %1, %cst {dimension_numbers = #tpu.dot_dimension_numbers<[1], [0], [0], [1], [0, 0, 1, 1], [], []>} : vector<8x256xf32>, vector<256x128xf32>, vector<8x128xf32> -> vector<8x128xf32>
    %c0_3 = arith.constant 0 : index
    %c0_4 = arith.constant 0 : index
    %3 = vector.load %arg3[%c0_3, %c0_4] : memref<1x128xf32, #tpu.memory_space<vmem>>, vector<1x128xf32>
    %4 = vector.broadcast %3 : vector<1x128xf32> to vector<8x128xf32>
    %5 = arith.addf %2, %4 : vector<8x128xf32>
    %cst_5 = arith.constant 0.000000e+00 : f32
    %6 = vector.broadcast %cst_5 : f32 to vector<8x128xf32>
    %7 = arith.maximumf %5, %6 : vector<8x128xf32>
    %c0_6 = arith.constant 0 : index
    %c0_7 = arith.constant 0 : index
    %8 = vector.load %arg4[%c0_6, %c0_7] : memref<128x64xf32, #tpu.memory_space<vmem>>, vector<128x64xf32>
    %cst_8 = arith.constant dense<0.000000e+00> : vector<8x64xf32>
    %9 = tpu.matmul %7, %8, %cst_8 {dimension_numbers = #tpu.dot_dimension_numbers<[1], [0], [0], [1], [0, 0, 1, 1], [], []>} : vector<8x128xf32>, vector<128x64xf32>, vector<8x64xf32> -> vector<8x64xf32>
    %c0_9 = arith.constant 0 : index
    %c0_10 = arith.constant 0 : index
    %10 = vector.load %arg5[%c0_9, %c0_10] : memref<1x64xf32, #tpu.memory_space<vmem>>, vector<1x64xf32>
    %11 = vector.broadcast %10 : vector<1x64xf32> to vector<8x64xf32>
    %12 = arith.addf %9, %11 : vector<8x64xf32>
    %cst_11 = arith.constant 0.000000e+00 : f32
    %13 = vector.broadcast %cst_11 : f32 to vector<8x64xf32>
    %14 = arith.maximumf %12, %13 : vector<8x64xf32>
    %c0_12 = arith.constant 0 : index
    %c0_13 = arith.constant 0 : index
    %15 = vector.load %arg6[%c0_12, %c0_13] : memref<64x64xf32, #tpu.memory_space<vmem>>, vector<64x64xf32>
    %cst_14 = arith.constant dense<0.000000e+00> : vector<8x64xf32>
    %16 = tpu.matmul %14, %15, %cst_14 {dimension_numbers = #tpu.dot_dimension_numbers<[1], [0], [0], [1], [0, 0, 1, 1], [], []>} : vector<8x64xf32>, vector<64x64xf32>, vector<8x64xf32> -> vector<8x64xf32>
    %c0_15 = arith.constant 0 : index
    %c0_16 = arith.constant 0 : index
    %17 = vector.load %arg7[%c0_15, %c0_16] : memref<1x64xf32, #tpu.memory_space<vmem>>, vector<1x64xf32>
    %18 = vector.broadcast %17 : vector<1x64xf32> to vector<8x64xf32>
    %19 = arith.addf %16, %18 : vector<8x64xf32>
    %cst_17 = arith.constant 0.000000e+00 : f32
    %20 = vector.broadcast %cst_17 : f32 to vector<8x64xf32>
    %21 = arith.maximumf %19, %20 : vector<8x64xf32>
    %c0_18 = arith.constant 0 : index
    %c0_19 = arith.constant 0 : index
    %22 = vector.load %arg8[%c0_18, %c0_19] : memref<64x2xf32, #tpu.memory_space<vmem>>, vector<64x2xf32>
    %cst_20 = arith.constant dense<0.000000e+00> : vector<8x2xf32>
    %23 = tpu.matmul %21, %22, %cst_20 {dimension_numbers = #tpu.dot_dimension_numbers<[1], [0], [0], [1], [0, 0, 1, 1], [], []>} : vector<8x64xf32>, vector<64x2xf32>, vector<8x2xf32> -> vector<8x2xf32>
    %c0_21 = arith.constant 0 : index
    %c0_22 = arith.constant 0 : index
    %24 = vector.load %arg9[%c0_21, %c0_22] : memref<1x2xf32, #tpu.memory_space<vmem>>, vector<1x2xf32>
    %25 = vector.broadcast %24 : vector<1x2xf32> to vector<8x2xf32>
    %26 = arith.addf %23, %25 : vector<8x2xf32>
    %c0_23 = arith.constant 0 : index
    %c0_24 = arith.constant 0 : index
    %27 = vector.load %arg10[%c0_23, %c0_24] : memref<8x2xf32, #tpu.memory_space<vmem>>, vector<8x2xf32>
    tpu.vector_store %arg10[%c0_23, %c0_24], %26 {strides = array<i32>} : memref<8x2xf32, #tpu.memory_space<vmem>>, vector<8x2xf32>,
    return
  }
  func.func @transform_0(%arg0: i32) -> (i32, i32) {
    %c0_i32 = arith.constant 0 : i32
    %c0_i32_0 = arith.constant 0 : i32
    return %arg0, %c0_i32 : i32, i32
  }
  func.func @transform_1(%arg0: i32) -> (i32, i32) {
    %c0_i32 = arith.constant 0 : i32
    %c0_i32_0 = arith.constant 0 : i32
    %c0_i32_1 = arith.constant 0 : i32
    return %c0_i32, %c0_i32_0 : i32, i32
  }
  func.func @transform_2(%arg0: i32) -> (i32, i32) {
    %c0_i32 = arith.constant 0 : i32
    %c0_i32_0 = arith.constant 0 : i32
    %c0_i32_1 = arith.constant 0 : i32
    return %c0_i32, %c0_i32_0 : i32, i32
  }
  func.func @transform_3(%arg0: i32) -> (i32, i32) {
    %c0_i32 = arith.constant 0 : i32
    %c0_i32_0 = arith.constant 0 : i32
    %c0_i32_1 = arith.constant 0 : i32
    return %c0_i32, %c0_i32_0 : i32, i32
  }
  func.func @transform_4(%arg0: i32) -> (i32, i32) {
    %c0_i32 = arith.constant 0 : i32
    %c0_i32_0 = arith.constant 0 : i32
    %c0_i32_1 = arith.constant 0 : i32
    return %c0_i32, %c0_i32_0 : i32, i32
  }
  func.func @transform_5(%arg0: i32) -> (i32, i32) {
    %c0_i32 = arith.constant 0 : i32
    %c0_i32_0 = arith.constant 0 : i32
    %c0_i32_1 = arith.constant 0 : i32
    return %c0_i32, %c0_i32_0 : i32, i32
  }
  func.func @transform_6(%arg0: i32) -> (i32, i32) {
    %c0_i32 = arith.constant 0 : i32
    %c0_i32_0 = arith.constant 0 : i32
    %c0_i32_1 = arith.constant 0 : i32
    return %c0_i32, %c0_i32_0 : i32, i32
  }
  func.func @transform_7(%arg0: i32) -> (i32, i32) {
    %c0_i32 = arith.constant 0 : i32
    %c0_i32_0 = arith.constant 0 : i32
    %c0_i32_1 = arith.constant 0 : i32
    return %c0_i32, %c0_i32_0 : i32, i32
  }
  func.func @transform_8(%arg0: i32) -> (i32, i32) {
    %c0_i32 = arith.constant 0 : i32
    %c0_i32_0 = arith.constant 0 : i32
    %c0_i32_1 = arith.constant 0 : i32
    return %c0_i32, %c0_i32_0 : i32, i32
  }
  func.func @transform_9(%arg0: i32) -> (i32, i32) {
    %c0_i32 = arith.constant 0 : i32
    %c0_i32_0 = arith.constant 0 : i32
    return %arg0, %c0_i32 : i32, i32
  }
}

</mosaic_0001>

<llo_original>
// kernel: leak_cls_dis_forward.1
$region0: #{leak_cls_dis_forward.1}
  #allocation0 [shape = 'u32[]', space=smem, size = 0x4, offset = 0x4, fixed_abs, tag = 'smem constant byte address 0x4 - core index']
  #allocation1 [shape = 'u32[144,128]{1,0:T(1,128)}', space=vmem, size = 0x12000, scoped, tag = 'internal scratch']
  %s0 = inlined_call_operand.vmem [shape: f32[24,256], index: 0, kind: input, shape index: {}]
  %s1 = inlined_call_operand.vmem [shape: f32[256,128], index: 1, kind: input, shape index: {}]
  %s2 = inlined_call_operand.vmem [shape: f32[1,128], index: 2, kind: input, shape index: {}]
  %s3 = inlined_call_operand.vmem [shape: f32[128,64], index: 3, kind: input, shape index: {}]
  %s4 = inlined_call_operand.vmem [shape: f32[1,64], index: 4, kind: input, shape index: {}]
  %s5 = inlined_call_operand.hbm [shape: f32[64,64], index: 5, kind: input, shape index: {}]
  %s6 = inlined_call_operand.vmem [shape: f32[1,64], index: 6, kind: input, shape index: {}]
  %s7 = inlined_call_operand.vmem [shape: f32[64,2], index: 7, kind: input, shape index: {}]
  %s8 = inlined_call_operand.vmem [shape: f32[1,2], index: 8, kind: input, shape index: {}]
  %s9 = inlined_call_operand.vmem [shape: f32[24,2], index: 9, kind: output, shape index: {}]
  %s10 = sld [smem:[#allocation0]]
  $region73: #{leak_cls_dis_forward.1} parent=0
    _
  %s12 = ssub.s32 1, %s10
  %s13 = scalar_select 0, %s12, %s10
  $region1: #{leak_cls_dis_forward.1} parent=0
    #allocation2 [shape = 'u8[32768]{0}', space=vmem, size = 0x8000, scoped, tag = 'input window, operand 5, single buffered']
    #allocation3 [shape = 's32[2]{0}', space=sflag, size = 0x8, scoped, tag = 'scoped memory for leak_cls_dis_forward.1']
    %14 = vsyncpa [#allocation3], 0
    loop: start=0, step=1, limit=5
    $region2: #{leak_cls_dis_forward.1} parent=1 // loop_pre_header
      _
    $region3: #{leak_cls_dis_forward.1} parent=1 // loop_header
      %s16 = sphi 0, %s20
      %p17 = scmp.ge.s32.totalorder %s16, 5
      %s26 = sphi 0, %s28
      %s29 = sphi 0, %s26
      %s30 = sphi 0, %s29
      %s46 = sphi 0, %s30
      %s50 = sphi 0, %s50
      %s52 = sphi 0, %s50
      %s53 = sphi 0, %s52
      %s67 = sphi 0, %s53
      %s71 = sphi 0, %s71
      %s73 = sphi 0, %s71
      %s74 = sphi 0, %s73
      %s88 = sphi 0, %s74
      %s92 = sphi 0, %s92
      %s94 = sphi 0, %s92
      %s95 = sphi 0, %s94
      %s109 = sphi 0, %s95
      %s113 = sphi 0, %s113
      %s115 = sphi 0, %s113
      %s116 = sphi 0, %s115
      %s130 = sphi 0, %s116
      %s134 = sphi 0, %s134
      %s136 = sphi 0, %s134
      %s137 = sphi 0, %s136
      %s151 = sphi 0, %s137
      %s155 = sphi 0, %s155
      %s157 = sphi 0, %s155
      %s158 = sphi 0, %s157
      %s172 = sphi 0, %s158
      %s176 = sphi 0, %s176
      %s178 = sphi 0, %s176
      %s179 = sphi 0, %s178
      %s193 = sphi 0, %s179
      %s197 = sphi 0, %s197
      %s199 = sphi 0, %s197
      %s200 = sphi 0, %s199
      %s214 = sphi 0, %s200
      %s220 = sphi 0, %s222
      %s223 = sphi 0, %s220
      %s224 = sphi 0, %s223
      %s240 = sphi 0, %s224
    $region4: #{leak_cls_dis_forward.1} parent=1 // loop_header_branch
      %19 = sbr.rel (%p17) target = $region8
    $region5: #{leak_cls_dis_forward.1} parent=1 // loop_body
      %s21 = ssub.s32 %s16, 1
      %s22 = ssub.s32 %s16, 2
      %s23 = sadd.s32 %s16, 1
      %s24 = ssub.s32 %s16, %s23
      %p25 = scmp.eq.s32.totalorder %s24, 0
      %s27 = sadd.s32 %s26, 1
      %s28 = scalar_select %p25, %s26, %s27
      %p31 = pneg %p25
      %p32 = scmp.eq.s32.totalorder %s16, 2
      %p33 = por %p31, %p32
      %p34 = scmp.ne.s32.totalorder %s26, %s29
      %p35 = scmp.eq.s32.totalorder %s16, 0
      %p36 = por %p34, %p35
      %p37 = scmp.ne.s32.totalorder %s26, %s29
      %p38 = scmp.eq.s32.totalorder %s21, 2
      %p39 = por %p37, %p38
      %p40 = scmp.ne.s32.totalorder %s29, %s30
      %p41 = scmp.eq.s32.totalorder %s21, 0
      %p42 = por %p40, %p41
      %p43 = scmp.ne.s32.totalorder %s29, %s30
      %p44 = scmp.eq.s32.totalorder %s22, 2
      %p45 = por %p43, %p44
      %p47 = scmp.ne.s32.totalorder %s30, %s46
      %p48 = scmp.eq.s32.totalorder %s22, 0
      %p49 = por %p47, %p48
      %s51 = sadd.s32 %s50, 1
      %p54 = scmp.eq.s32.totalorder %s16, 2
      %p55 = scmp.ne.s32.totalorder %s50, %s52
      %p56 = scmp.eq.s32.totalorder %s16, 0
      %p57 = por %p55, %p56
      %p58 = scmp.ne.s32.totalorder %s50, %s52
      %p59 = scmp.eq.s32.totalorder %s21, 2
      %p60 = por %p58, %p59
      %p61 = scmp.ne.s32.totalorder %s52, %s53
      %p62 = scmp.eq.s32.totalorder %s21, 0
      %p63 = por %p61, %p62
      %p64 = scmp.ne.s32.totalorder %s52, %s53
      %p65 = scmp.eq.s32.totalorder %s22, 2
      %p66 = por %p64, %p65
      %p68 = scmp.ne.s32.totalorder %s53, %s67
      %p69 = scmp.eq.s32.totalorder %s22, 0
      %p70 = por %p68, %p69
      %s72 = sadd.s32 %s71, 1
      %p75 = scmp.eq.s32.totalorder %s16, 2
      %p76 = scmp.ne.s32.totalorder %s71, %s73
      %p77 = scmp.eq.s32.totalorder %s16, 0
      %p78 = por %p76, %p77
      %p79 = scmp.ne.s32.totalorder %s71, %s73
      %p80 = scmp.eq.s32.totalorder %s21, 2
      %p81 = por %p79, %p80
      %p82 = scmp.ne.s32.totalorder %s73, %s74
      %p83 = scmp.eq.s32.totalorder %s21, 0
      %p84 = por %p82, %p83
      %p85 = scmp.ne.s32.totalorder %s73, %s74
      %p86 = scmp.eq.s32.totalorder %s22, 2
      %p87 = por %p85, %p86
      %p89 = scmp.ne.s32.totalorder %s74, %s88
      %p90 = scmp.eq.s32.totalorder %s22, 0
      %p91 = por %p89, %p90
      %s93 = sadd.s32 %s92, 1
      %p96 = scmp.eq.s32.totalorder %s16, 2
      %p97 = scmp.ne.s32.totalorder %s92, %s94
      %p98 = scmp.eq.s32.totalorder %s16, 0
      %p99 = por %p97, %p98
      %p100 = scmp.ne.s32.totalorder %s92, %s94
      %p101 = scmp.eq.s32.totalorder %s21, 2
      %p102 = por %p100, %p101
      %p103 = scmp.ne.s32.totalorder %s94, %s95
      %p104 = scmp.eq.s32.totalorder %s21, 0
      %p105 = por %p103, %p104
      %p106 = scmp.ne.s32.totalorder %s94, %s95
      %p107 = scmp.eq.s32.totalorder %s22, 2
      %p108 = por %p106, %p107
      %p110 = scmp.ne.s32.totalorder %s95, %s109
      %p111 = scmp.eq.s32.totalorder %s22, 0
      %p112 = por %p110, %p111
      %s114 = sadd.s32 %s113, 1
      %p117 = scmp.eq.s32.totalorder %s16, 2
      %p118 = scmp.ne.s32.totalorder %s113, %s115
      %p119 = scmp.eq.s32.totalorder %s16, 0
      %p120 = por %p118, %p119
      %p121 = scmp.ne.s32.totalorder %s113, %s115
      %p122 = scmp.eq.s32.totalorder %s21, 2
      %p123 = por %p121, %p122
      %p124 = scmp.ne.s32.totalorder %s115, %s116
      %p125 = scmp.eq.s32.totalorder %s21, 0
      %p126 = por %p124, %p125
      %p127 = scmp.ne.s32.totalorder %s115, %s116
      %p128 = scmp.eq.s32.totalorder %s22, 2
      %p129 = por %p127, %p128
      %p131 = scmp.ne.s32.totalorder %s116, %s130
      %p132 = scmp.eq.s32.totalorder %s22, 0
      %p133 = por %p131, %p132
      %s135 = sadd.s32 %s134, 1
      %p138 = scmp.eq.s32.totalorder %s16, 2
      %p139 = scmp.ne.s32.totalorder %s134, %s136
      %p140 = scmp.eq.s32.totalorder %s16, 0
      %p141 = por %p139, %p140
      %p142 = scmp.ne.s32.totalorder %s134, %s136
      %p143 = scmp.eq.s32.totalorder %s21, 2
      %p144 = por %p142, %p143
      %p145 = scmp.ne.s32.totalorder %s136, %s137
      %p146 = scmp.eq.s32.totalorder %s21, 0
      %p147 = por %p145, %p146
      %p148 = scmp.ne.s32.totalorder %s136, %s137
      %p149 = scmp.eq.s32.totalorder %s22, 2
      %p150 = por %p148, %p149
      %p152 = scmp.ne.s32.totalorder %s137, %s151
      %p153 = scmp.eq.s32.totalorder %s22, 0
      %p154 = por %p152, %p153
      %s156 = sadd.s32 %s155, 1
      %p159 = scmp.eq.s32.totalorder %s16, 2
      %p160 = scmp.ne.s32.totalorder %s155, %s157
      %p161 = scmp.eq.s32.totalorder %s16, 0
      %p162 = por %p160, %p161
      %p163 = scmp.ne.s32.totalorder %s155, %s157
      %p164 = scmp.eq.s32.totalorder %s21, 2
      %p165 = por %p163, %p164
      %p166 = scmp.ne.s32.totalorder %s157, %s158
      %p167 = scmp.eq.s32.totalorder %s21, 0
      %p168 = por %p166, %p167
      %p169 = scmp.ne.s32.totalorder %s157, %s158
      %p170 = scmp.eq.s32.totalorder %s22, 2
      %p171 = por %p169, %p170
      %p173 = scmp.ne.s32.totalorder %s158, %s172
      %p174 = scmp.eq.s32.totalorder %s22, 0
      %p175 = por %p173, %p174
      %s177 = sadd.s32 %s176, 1
      %p180 = scmp.eq.s32.totalorder %s16, 2
      %p181 = scmp.ne.s32.totalorder %s176, %s178
      %p182 = scmp.eq.s32.totalorder %s16, 0
      %p183 = por %p181, %p182
      %p184 = scmp.ne.s32.totalorder %s176, %s178
      %p185 = scmp.eq.s32.totalorder %s21, 2
      %p186 = por %p184, %p185
      %p187 = scmp.ne.s32.totalorder %s178, %s179
      %p188 = scmp.eq.s32.totalorder %s21, 0
      %p189 = por %p187, %p188
      %p190 = scmp.ne.s32.totalorder %s178, %s179
      %p191 = scmp.eq.s32.totalorder %s22, 2
      %p192 = por %p190, %p191
      %p194 = scmp.ne.s32.totalorder %s179, %s193
      %p195 = scmp.eq.s32.totalorder %s22, 0
      %p196 = por %p194, %p195
      %s198 = sadd.s32 %s197, 1
      %p201 = scmp.eq.s32.totalorder %s16, 2
      %p202 = scmp.ne.s32.totalorder %s197, %s199
      %p203 = scmp.eq.s32.totalorder %s16, 0
      %p204 = por %p202, %p203
      %p205 = scmp.ne.s32.totalorder %s197, %s199
      %p206 = scmp.eq.s32.totalorder %s21, 2
      %p207 = por %p205, %p206
      %p208 = scmp.ne.s32.totalorder %s199, %s200
      %p209 = scmp.eq.s32.totalorder %s21, 0
      %p210 = por %p208, %p209
      %p211 = scmp.ne.s32.totalorder %s199, %s200
      %p212 = scmp.eq.s32.totalorder %s22, 2
      %p213 = por %p211, %p212
      %p215 = scmp.ne.s32.totalorder %s200, %s214
      %p216 = scmp.eq.s32.totalorder %s22, 0
      %p217 = por %p215, %p216
      %s218 = ssub.s32 %s16, %s23
      %p219 = scmp.eq.s32.totalorder %s218, 0
      %s221 = sadd.s32 %s220, 1
      %s222 = scalar_select %p219, %s220, %s221
      %p225 = pneg %p219
      %p226 = scmp.eq.s32.totalorder %s16, 2
      %p227 = por %p225, %p226
      %p228 = scmp.ne.s32.totalorder %s220, %s223
      %p229 = scmp.eq.s32.totalorder %s16, 0
      %p230 = por %p228, %p229
      %p231 = scmp.ne.s32.totalorder %s220, %s223
      %p232 = scmp.eq.s32.totalorder %s21, 2
      %p233 = por %p231, %p232
      %p234 = scmp.ne.s32.totalorder %s223, %s224
      %p235 = scmp.eq.s32.totalorder %s21, 0
      %p236 = por %p234, %p235
      %p237 = scmp.ne.s32.totalorder %s223, %s224
      %p238 = scmp.eq.s32.totalorder %s22, 2
      %p239 = por %p237, %p238
      %p241 = scmp.ne.s32.totalorder %s224, %s240
      %p242 = scmp.eq.s32.totalorder %s22, 0
      %p243 = por %p241, %p242
      %p244 = scmp.le.s32.totalorder 1, %s16
      %p245 = scmp.lt.s32.totalorder %s16, 4
      %p246 = pnand %p244, %p245
      %p247 = pneg %p246
      // Predicated region
      $region9: #{leak_cls_dis_forward.1} parent=5 // pred_check
        _
      $region10: #{leak_cls_dis_forward.1} parent=5 // pred_check_branch
        %249 = sbr.rel (%p246) target = $region12
      $region11: #{leak_cls_dis_forward.1} parent=5 // pred_region
        %s250 = ssub.s32 %s16, 1
        // Predicated region
        $region13: #{leak_cls_dis_forward.1} parent=11 // pred_check
          %p251 = pneg %p63
        $region14: #{leak_cls_dis_forward.1} parent=11 // pred_check_branch
          %253 = sbr.rel (%p251) target = $region16
        $region15: #{leak_cls_dis_forward.1} parent=11 // pred_region
          _
        $region16: #{leak_cls_dis_forward.1} parent=11 // pred_fallthru
          _
        // Predicated region
        $region17: #{leak_cls_dis_forward.1} parent=11 // pred_check
          %p254 = pneg %p84
        $region18: #{leak_cls_dis_forward.1} parent=11 // pred_check_branch
          %256 = sbr.rel (%p254) target = $region20
        $region19: #{leak_cls_dis_forward.1} parent=11 // pred_region
          _
        $region20: #{leak_cls_dis_forward.1} parent=11 // pred_fallthru
          _
        // Predicated region
        $region21: #{leak_cls_dis_forward.1} parent=11 // pred_check
          %p257 = pneg %p105
        $region22: #{leak_cls_dis_forward.1} parent=11 // pred_check_branch
          %259 = sbr.rel (%p257) target = $region24
        $region23: #{leak_cls_dis_forward.1} parent=11 // pred_region
          _
        $region24: #{leak_cls_dis_forward.1} parent=11 // pred_fallthru
          _
        // Predicated region
        $region25: #{leak_cls_dis_forward.1} parent=11 // pred_check
          %p260 = pneg %p126
        $region26: #{leak_cls_dis_forward.1} parent=11 // pred_check_branch
          %262 = sbr.rel (%p260) target = $region28
        $region27: #{leak_cls_dis_forward.1} parent=11 // pred_region
          _
        $region28: #{leak_cls_dis_forward.1} parent=11 // pred_fallthru
          _
        // Predicated region
        $region29: #{leak_cls_dis_forward.1} parent=11 // pred_check
          %p263 = pneg %p147
        $region30: #{leak_cls_dis_forward.1} parent=11 // pred_check_branch
          %265 = sbr.rel (%p263) target = $region32
        $region31: #{leak_cls_dis_forward.1} parent=11 // pred_region
          %s267 = ssub.s32 1024, 1024
          %268 = vsyncadd [#allocation3], %s267
          %s269 = sshll.u32 [#allocation2], 4
          %s270 = int_to_ptr.vmem [resolvable:$true] %s269
          %275 = dma.hbm_to_vmem [thread:$0]  %s5, 1024, %s270, [#allocation3], 128, 128, 8
        $region32: #{leak_cls_dis_forward.1} parent=11 // pred_fallthru
          _
        // Predicated region
        $region33: #{leak_cls_dis_forward.1} parent=11 // pred_check
          %p276 = pneg %p168
        $region34: #{leak_cls_dis_forward.1} parent=11 // pred_check_branch
          %278 = sbr.rel (%p276) target = $region36
        $region35: #{leak_cls_dis_forward.1} parent=11 // pred_region
          _
        $region36: #{leak_cls_dis_forward.1} parent=11 // pred_fallthru
          _
        // Predicated region
        $region37: #{leak_cls_dis_forward.1} parent=11 // pred_check
          %p279 = pneg %p189
        $region38: #{leak_cls_dis_forward.1} parent=11 // pred_check_branch
          %281 = sbr.rel (%p279) target = $region40
        $region39: #{leak_cls_dis_forward.1} parent=11 // pred_region
          _
        $region40: #{leak_cls_dis_forward.1} parent=11 // pred_fallthru
          _
        // Predicated region
        $region41: #{leak_cls_dis_forward.1} parent=11 // pred_check
          %p282 = pneg %p210
        $region42: #{leak_cls_dis_forward.1} parent=11 // pred_check_branch
          %284 = sbr.rel (%p282) target = $region44
        $region43: #{leak_cls_dis_forward.1} parent=11 // pred_region
          _
        $region44: #{leak_cls_dis_forward.1} parent=11 // pred_fallthru
          _
      $region12: #{leak_cls_dis_forward.1} parent=5 // pred_fallthru
        _
      %p285 = scmp.lt.s32.totalorder %s16, 3
      // Predicated region
      $region45: #{leak_cls_dis_forward.1} parent=5 // pred_check
        %p286 = pneg %p285
      $region46: #{leak_cls_dis_forward.1} parent=5 // pred_check_branch
        %288 = sbr.rel (%p286) target = $region48
      $region47: #{leak_cls_dis_forward.1} parent=5 // pred_region
        // Predicated region
        $region49: #{leak_cls_dis_forward.1} parent=47 // pred_check
          %p289 = pneg %p36
        $region50: #{leak_cls_dis_forward.1} parent=47 // pred_check_branch
          %291 = sbr.rel (%p289) target = $region52
        $region51: #{leak_cls_dis_forward.1} parent=47 // pred_region
          %p292 = scmp.lt.s32.totalorder %s16, 2
          %s293 = scalar_select %p292, %s16, 2
          %s294 = smul.addr %s293, 2
          %s295 = smul.addr %s294, 8
          %s296 = scalar_lea.vmem %s0, %s295
        $region52: #{leak_cls_dis_forward.1} parent=47 // pred_fallthru
          _
      $region48: #{leak_cls_dis_forward.1} parent=5 // pred_fallthru
        _
      %p297 = scmp.le.s32.totalorder 1, %s16
      %p298 = scmp.lt.s32.totalorder %s16, 4
      %p299 = pnand %p297, %p298
      %p300 = pneg %p299
      // Predicated region
      $region53: #{leak_cls_dis_forward.1} parent=5 // pred_check
        _
      $region54: #{leak_cls_dis_forward.1} parent=5 // pred_check_branch
        %302 = sbr.rel (%p299) target = $region56
      $region55: #{leak_cls_dis_forward.1} parent=5 // pred_region
        %s303 = ssub.s32 %s16, 1
        // Predicated region
        $region57: #{leak_cls_dis_forward.1} parent=55 // pred_check
          %p304 = pneg %p147
        $region58: #{leak_cls_dis_forward.1} parent=55 // pred_check_branch
          %306 = sbr.rel (%p304) target = $region60
        $region59: #{leak_cls_dis_forward.1} parent=55 // pred_region
          %307 = dma.done [#allocation3], 1024
        $region60: #{leak_cls_dis_forward.1} parent=55 // pred_fallthru
          _
        %p308 = scmp.lt.s32.totalorder %s21, 2
        %s309 = scalar_select %p308, %s21, 2
        %s310 = smul.addr %s309, 2
        %s311 = smul.addr %s310, 8
        %s312 = scalar_lea.vmem %s0, %s311
        %p313 = pneg %p42
        %p314 = pneg %p39
        %p315 = pneg %p63
        %p316 = pneg %p60
        %p317 = pneg %p84
        %p318 = pneg %p81
        %p319 = pneg %p105
        %p320 = pneg %p102
        %p321 = pneg %p126
        %p322 = pneg %p123
        %p323 = pneg %p147
        %p324 = pneg %p144
        %p325 = pneg %p168
        %p326 = pneg %p165
        %p327 = pneg %p189
        %p328 = pneg %p186
        %p329 = pneg %p210
        %p330 = pneg %p207
        %p331 = pneg %p236
        %p332 = pneg %p233
        %p333 = scmp.lt.s32.totalorder %s21, 2
        %s334 = scalar_select %p333, %s21, 2
        %s335 = smul.addr %s334, 8
        %s336 = scalar_lea.vmem %s9, %s335
        %p337 = scmp.lt.s32.totalorder %s21, 2
        %s338 = scalar_select %p337, %s21, 2
        %s339 = smul.addr %s338, 2
        %s340 = smul.addr %s339, 8
        %s341 = scalar_lea.vmem %s0, %s340
        %p342 = scmp.lt.s32.totalorder %s21, 2
        %s343 = scalar_select %p342, %s21, 2
        %s344 = smul.addr %s343, 8
        %s345 = scalar_lea.vmem %s9, %s344
        %v346 = vld [vmem:[%s341] sm:$0xff]
        %v347 = vld [vmem:[%s341 + $0x8] sm:$0xff]
        %v348 = vld [vmem:[%s1] sm:$0xff]
        %v349 = vld [vmem:[%s1 + $0x8] sm:$0xff]
        %v350 = vld [vmem:[%s1 + $0x10] sm:$0xff]
        %v351 = vld [vmem:[%s1 + $0x18] sm:$0xff]
        %v352 = vld [vmem:[%s1 + $0x20] sm:$0xff]
        %v353 = vld [vmem:[%s1 + $0x28] sm:$0xff]
        %v354 = vld [vmem:[%s1 + $0x30] sm:$0xff]
        %v355 = vld [vmem:[%s1 + $0x38] sm:$0xff]
        %v356 = vld [vmem:[%s1 + $0x40] sm:$0xff]
        %v357 = vld [vmem:[%s1 + $0x48] sm:$0xff]
        %v358 = vld [vmem:[%s1 + $0x50] sm:$0xff]
        %v359 = vld [vmem:[%s1 + $0x58] sm:$0xff]
        %v360 = vld [vmem:[%s1 + $0x60] sm:$0xff]
        %v361 = vld [vmem:[%s1 + $0x68] sm:$0xff]
        %v362 = vld [vmem:[%s1 + $0x70] sm:$0xff]
        %v363 = vld [vmem:[%s1 + $0x78] sm:$0xff]
        %v364 = vld [vmem:[%s1 + $0x80] sm:$0xff]
        %v365 = vld [vmem:[%s1 + $0x88] sm:$0xff]
        %v366 = vld [vmem:[%s1 + $0x90] sm:$0xff]
        %v367 = vld [vmem:[%s1 + $0x98] sm:$0xff]
        %v368 = vld [vmem:[%s1 + $0xa0] sm:$0xff]
        %v369 = vld [vmem:[%s1 + $0xa8] sm:$0xff]
        %v370 = vld [vmem:[%s1 + $0xb0] sm:$0xff]
        %v371 = vld [vmem:[%s1 + $0xb8] sm:$0xff]
        %v372 = vld [vmem:[%s1 + $0xc0] sm:$0xff]
        %v373 = vld [vmem:[%s1 + $0xc8] sm:$0xff]
        %v374 = vld [vmem:[%s1 + $0xd0] sm:$0xff]
        %v375 = vld [vmem:[%s1 + $0xd8] sm:$0xff]
        %v376 = vld [vmem:[%s1 + $0xe0] sm:$0xff]
        %v377 = vld [vmem:[%s1 + $0xe8] sm:$0xff]
        %v378 = vld [vmem:[%s1 + $0xf0] sm:$0xff]
        %v379 = vld [vmem:[%s1 + $0xf8] sm:$0xff]
        %v380 = vld [vmem:[%s2] sm:$0x1]
        %v382 = vlaneseq
        %v383 = vshrl.u32 %v382, 7
        %v384 = vsub.s32 0, %v383
        %v385 = vrot.slane %v380, %v384
        %387 = vmatprep.subr.mxu0 0.0
        %388 = vmatpush1.msra.mxu0 %v363
        %389 = vmatprep.subr.mxu0 0.0
        %390 = vmatpush1.msra.mxu0 %v362
        %391 = vmatprep.subr.mxu0 0.0
        %392 = vmatpush1.msra.mxu0 %v361
        %393 = vmatprep.subr.mxu0 0.0
        %394 = vmatpush1.msra.mxu0 %v360
        %395 = vmatprep.subr.mxu0 0.0
        %396 = vmatpush1.msra.mxu0 %v359
        %397 = vmatprep.subr.mxu0 0.0
        %398 = vmatpush1.msra.mxu0 %v358
        %399 = vmatprep.subr.mxu0 0.0
        %400 = vmatpush1.msra.mxu0 %v357
        %401 = vmatprep.subr.mxu0 0.0
        %402 = vmatpush1.msra.mxu0 %v356
        %403 = vmatprep.subr.mxu0 0.0
        %404 = vmatpush1.msra.mxu0 %v355
        %405 = vmatprep.subr.mxu0 0.0
        %406 = vmatpush1.msra.mxu0 %v354
        %407 = vmatprep.subr.mxu0 0.0
        %408 = vmatpush1.msra.mxu0 %v353
        %409 = vmatprep.subr.mxu0 0.0
        %410 = vmatpush1.msra.mxu0 %v352
        %411 = vmatprep.subr.mxu0 0.0
        %412 = vmatpush1.msra.mxu0 %v351
        %413 = vmatprep.subr.mxu0 0.0
        %414 = vmatpush1.msra.mxu0 %v350
        %415 = vmatprep.subr.mxu0 0.0
        %416 = vmatpush1.msra.mxu0 %v349
        %417 = vmatprep.subr.mxu0 0.0
        %418 = vmatpush1.msra.mxu0 %v348
        %419 = vmatprep.subr.mxu0 0.0
        %420 = vmatpush2.msra.mxu0 %v379
        %421 = vmatprep.subr.mxu0 0.0
        %422 = vmatpush2.msra.mxu0 %v378
        %423 = vmatprep.subr.mxu0 0.0
        %424 = vmatpush2.msra.mxu0 %v377
        %425 = vmatprep.subr.mxu0 0.0
        %426 = vmatpush2.msra.mxu0 %v376
        %427 = vmatprep.subr.mxu0 0.0
        %428 = vmatpush2.msra.mxu0 %v375
        %429 = vmatprep.subr.mxu0 0.0
        %430 = vmatpush2.msra.mxu0 %v374
        %431 = vmatprep.subr.mxu0 0.0
        %432 = vmatpush2.msra.mxu0 %v373
        %433 = vmatprep.subr.mxu0 0.0
        %434 = vmatpush2.msra.mxu0 %v372
        %435 = vmatprep.subr.mxu0 0.0
        %436 = vmatpush2.msra.mxu0 %v371
        %437 = vmatprep.subr.mxu0 0.0
        %438 = vmatpush2.msra.mxu0 %v370
        %439 = vmatprep.subr.mxu0 0.0
        %440 = vmatpush2.msra.mxu0 %v369
        %441 = vmatprep.subr.mxu0 0.0
        %442 = vmatpush2.msra.mxu0 %v368
        %443 = vmatprep.subr.mxu0 0.0
        %444 = vmatpush2.msra.mxu0 %v367
        %445 = vmatprep.subr.mxu0 0.0
        %446 = vmatpush2.msra.mxu0 %v366
        %447 = vmatprep.subr.mxu0 0.0
        %448 = vmatpush2.msra.mxu0 %v365
        %449 = vmatprep.subr.mxu0 0.0
        %450 = vmatpush2.msra.mxu0 %v364
        %451 = vmatprep.mubr.f32.mxu0 %v347
        %452 = vmatmul.mubr.f32.gmra.mxu0 %v346
        %v453 = vpop.f32.mrf.mxu0
        %v454 = vadd.f32 %v385, %v453
        %v455 = vpop.f32.mrf.mxu0
        %456 = vdwg.mxu0
        %v457 = vmax.f32 %v454, 0.0
        %v458 = vld [vmem:[%s3] sm:$0xff]
        %v459 = vld [vmem:[%s3 + $0x8] sm:$0xff]
        %v460 = vld [vmem:[%s3 + $0x10] sm:$0xff]
        %v461 = vld [vmem:[%s3 + $0x18] sm:$0xff]
        %v462 = vld [vmem:[%s3 + $0x20] sm:$0xff]
        %v463 = vld [vmem:[%s3 + $0x28] sm:$0xff]
        %v464 = vld [vmem:[%s3 + $0x30] sm:$0xff]
        %v465 = vld [vmem:[%s3 + $0x38] sm:$0xff]
        %v466 = vld [vmem:[%s3 + $0x40] sm:$0xff]
        %v467 = vld [vmem:[%s3 + $0x48] sm:$0xff]
        %v468 = vld [vmem:[%s3 + $0x50] sm:$0xff]
        %v469 = vld [vmem:[%s3 + $0x58] sm:$0xff]
        %v470 = vld [vmem:[%s3 + $0x60] sm:$0xff]
        %v471 = vld [vmem:[%s3 + $0x68] sm:$0xff]
        %v472 = vld [vmem:[%s3 + $0x70] sm:$0xff]
        %v473 = vld [vmem:[%s3 + $0x78] sm:$0xff]
        %v474 = vld [vmem:[%s4] sm:$0x1]
        %v476 = vlaneseq
        %v477 = vshrl.u32 %v476, 7
        %v478 = vsub.s32 0, %v477
        %v479 = vrot.slane %v474, %v478
        %481 = vmatprep.subr.mxu0 0.0
        %482 = vmatpush1.msra.mxu0 %v473
        %483 = vmatprep.subr.mxu0 0.0
        %484 = vmatpush1.msra.mxu0 %v472
        %485 = vmatprep.subr.mxu0 0.0
        %486 = vmatpush1.msra.mxu0 %v471
        %487 = vmatprep.subr.mxu0 0.0
        %488 = vmatpush1.msra.mxu0 %v470
        %489 = vmatprep.subr.mxu0 0.0
        %490 = vmatpush1.msra.mxu0 %v469
        %491 = vmatprep.subr.mxu0 0.0
        %492 = vmatpush1.msra.mxu0 %v468
        %493 = vmatprep.subr.mxu0 0.0
        %494 = vmatpush1.msra.mxu0 %v467
        %495 = vmatprep.subr.mxu0 0.0
        %496 = vmatpush1.msra.mxu0 %v466
        %497 = vmatprep.subr.mxu0 0.0
        %498 = vmatpush1.msra.mxu0 %v465
        %499 = vmatprep.subr.mxu0 0.0
        %500 = vmatpush1.msra.mxu0 %v464
        %501 = vmatprep.subr.mxu0 0.0
        %502 = vmatpush1.msra.mxu0 %v463
        %503 = vmatprep.subr.mxu0 0.0
        %504 = vmatpush1.msra.mxu0 %v462
        %505 = vmatprep.subr.mxu0 0.0
        %506 = vmatpush1.msra.mxu0 %v461
        %507 = vmatprep.subr.mxu0 0.0
        %508 = vmatpush1.msra.mxu0 %v460
        %509 = vmatprep.subr.mxu0 0.0
        %510 = vmatpush1.msra.mxu0 %v459
        %511 = vmatprep.subr.mxu0 0.0
        %512 = vmatpush1.msra.mxu0 %v458
        %513 = vmatprep.subr.mxu0 0.0
        %514 = vmatpush2.msra.mxu0 0.0
        %515 = vmatprep.subr.mxu0 0.0
        %516 = vmatpush2.msra.mxu0 0.0
        %517 = vmatprep.subr.mxu0 0.0
        %518 = vmatpush2.msra.mxu0 0.0
        %519 = vmatprep.subr.mxu0 0.0
        %520 = vmatpush2.msra.mxu0 0.0
        %521 = vmatprep.subr.mxu0 0.0
        %522 = vmatpush2.msra.mxu0 0.0
        %523 = vmatprep.subr.mxu0 0.0
        %524 = vmatpush2.msra.mxu0 0.0
        %525 = vmatprep.subr.mxu0 0.0
        %526 = vmatpush2.msra.mxu0 0.0
        %527 = vmatprep.subr.mxu0 0.0
        %528 = vmatpush2.msra.mxu0 0.0
        %529 = vmatprep.subr.mxu0 0.0
        %530 = vmatpush2.msra.mxu0 0.0
        %531 = vmatprep.subr.mxu0 0.0
        %532 = vmatpush2.msra.mxu0 0.0
        %533 = vmatprep.subr.mxu0 0.0
        %534 = vmatpush2.msra.mxu0 0.0
        %535 = vmatprep.subr.mxu0 0.0
        %536 = vmatpush2.msra.mxu0 0.0
        %537 = vmatprep.subr.mxu0 0.0
        %538 = vmatpush2.msra.mxu0 0.0
        %539 = vmatprep.subr.mxu0 0.0
        %540 = vmatpush2.msra.mxu0 0.0
        %541 = vmatprep.subr.mxu0 0.0
        %542 = vmatpush2.msra.mxu0 0.0
        %543 = vmatprep.subr.mxu0 0.0
        %544 = vmatpush2.msra.mxu0 0.0
        %545 = vmatprep.mubr.f32.mxu0 0.0
        %546 = vmatmul.mubr.f32.gmra.mxu0 %v457
        %v547 = vpop.f32.mrf.mxu0
        %v548 = vadd.f32 %v479, %v547
        %v549 = vpop.f32.mrf.mxu0
        %550 = vdwg.mxu0
        %v551 = vmax.f32 %v548, 0.0
        %v552 = vld [vmem:[#allocation2] sm:$0xff]
        %v553 = vld [vmem:[#allocation2 + $0x8] sm:$0xff]
        %v554 = vld [vmem:[#allocation2 + $0x10] sm:$0xff]
        %v555 = vld [vmem:[#allocation2 + $0x18] sm:$0xff]
        %v556 = vld [vmem:[#allocation2 + $0x20] sm:$0xff]
        %v557 = vld [vmem:[#allocation2 + $0x28] sm:$0xff]
        %v558 = vld [vmem:[#allocation2 + $0x30] sm:$0xff]
        %v559 = vld [vmem:[#allocation2 + $0x38] sm:$0xff]
        %v560 = vld [vmem:[%s6] sm:$0x1]
        %v562 = vlaneseq
        %v563 = vshrl.u32 %v562, 7
        %v564 = vsub.s32 0, %v563
        %v565 = vrot.slane %v560, %v564
        %vm567 = vcmask 523264
        %v569 = vsel %vm567, %v551, 0
        %571 = vmatprep.subr.mxu0 0.0
        %572 = vmatpush1.msra.mxu0 0.0
        %573 = vmatprep.subr.mxu0 0.0
        %574 = vmatpush1.msra.mxu0 0.0
        %575 = vmatprep.subr.mxu0 0.0
        %576 = vmatpush1.msra.mxu0 0.0
        %577 = vmatprep.subr.mxu0 0.0
        %578 = vmatpush1.msra.mxu0 0.0
        %579 = vmatprep.subr.mxu0 0.0
        %580 = vmatpush1.msra.mxu0 0.0
        %581 = vmatprep.subr.mxu0 0.0
        %582 = vmatpush1.msra.mxu0 0.0
        %583 = vmatprep.subr.mxu0 0.0
        %584 = vmatpush1.msra.mxu0 0.0
        %585 = vmatprep.subr.mxu0 0.0
        %586 = vmatpush1.msra.mxu0 0.0
        %587 = vmatprep.subr.mxu0 0.0
        %588 = vmatpush1.msra.mxu0 %v559
        %589 = vmatprep.subr.mxu0 0.0
        %590 = vmatpush1.msra.mxu0 %v558
        %591 = vmatprep.subr.mxu0 0.0
        %592 = vmatpush1.msra.mxu0 %v557
        %593 = vmatprep.subr.mxu0 0.0
        %594 = vmatpush1.msra.mxu0 %v556
        %595 = vmatprep.subr.mxu0 0.0
        %596 = vmatpush1.msra.mxu0 %v555
        %597 = vmatprep.subr.mxu0 0.0
        %598 = vmatpush1.msra.mxu0 %v554
        %599 = vmatprep.subr.mxu0 0.0
        %600 = vmatpush1.msra.mxu0 %v553
        %601 = vmatprep.subr.mxu0 0.0
        %602 = vmatpush1.msra.mxu0 %v552
        %603 = vmatprep.subr.mxu0 0.0
        %604 = vmatpush2.msra.mxu0 0.0
        %605 = vmatprep.subr.mxu0 0.0
        %606 = vmatpush2.msra.mxu0 0.0
        %607 = vmatprep.subr.mxu0 0.0
        %608 = vmatpush2.msra.mxu0 0.0
        %609 = vmatprep.subr.mxu0 0.0
        %610 = vmatpush2.msra.mxu0 0.0
        %611 = vmatprep.subr.mxu0 0.0
        %612 = vmatpush2.msra.mxu0 0.0
        %613 = vmatprep.subr.mxu0 0.0
        %614 = vmatpush2.msra.mxu0 0.0
        %615 = vmatprep.subr.mxu0 0.0
        %616 = vmatpush2.msra.mxu0 0.0
        %617 = vmatprep.subr.mxu0 0.0
        %618 = vmatpush2.msra.mxu0 0.0
        %619 = vmatprep.subr.mxu0 0.0
        %620 = vmatpush2.msra.mxu0 0.0
        %621 = vmatprep.subr.mxu0 0.0
        %622 = vmatpush2.msra.mxu0 0.0
        %623 = vmatprep.subr.mxu0 0.0
        %624 = vmatpush2.msra.mxu0 0.0
        %625 = vmatprep.subr.mxu0 0.0
        %626 = vmatpush2.msra.mxu0 0.0
        %627 = vmatprep.subr.mxu0 0.0
        %628 = vmatpush2.msra.mxu0 0.0
        %629 = vmatprep.subr.mxu0 0.0
        %630 = vmatpush2.msra.mxu0 0.0
        %631 = vmatprep.subr.mxu0 0.0
        %632 = vmatpush2.msra.mxu0 0.0
        %633 = vmatprep.subr.mxu0 0.0
        %634 = vmatpush2.msra.mxu0 0.0
        %635 = vmatprep.mubr.f32.mxu0 0.0
        %636 = vmatmul.mubr.f32.gmra.mxu0 %v569
        %v637 = vpop.f32.mrf.mxu0
        %v638 = vadd.f32 %v565, %v637
        %v639 = vpop.f32.mrf.mxu0
        %640 = vdwg.mxu0
        %v641 = vmax.f32 %v638, 0.0
        %v642 = vld [vmem:[%s7] sm:$0xff]
        %v643 = vld [vmem:[%s7 + $0x8] sm:$0xff]
        %v644 = vld [vmem:[%s7 + $0x10] sm:$0xff]
        %v645 = vld [vmem:[%s7 + $0x18] sm:$0xff]
        %v646 = vld [vmem:[%s7 + $0x20] sm:$0xff]
        %v647 = vld [vmem:[%s7 + $0x28] sm:$0xff]
        %v648 = vld [vmem:[%s7 + $0x30] sm:$0xff]
        %v649 = vld [vmem:[%s7 + $0x38] sm:$0xff]
        %v650 = vld [vmem:[%s8] sm:$0x1]
        %v652 = vlaneseq
        %v653 = vshrl.u32 %v652, 7
        %v654 = vsub.s32 0, %v653
        %v655 = vrot.slane %v650, %v654
        %v658 = vsel %vm567, %v641, 0
        %660 = vmatprep.subr.mxu0 0.0
        %661 = vmatpush1.msra.mxu0 0.0
        %662 = vmatprep.subr.mxu0 0.0
        %663 = vmatpush1.msra.mxu0 0.0
        %664 = vmatprep.subr.mxu0 0.0
        %665 = vmatpush1.msra.mxu0 0.0
        %666 = vmatprep.subr.mxu0 0.0
        %667 = vmatpush1.msra.mxu0 0.0
        %668 = vmatprep.subr.mxu0 0.0
        %669 = vmatpush1.msra.mxu0 0.0
        %670 = vmatprep.subr.mxu0 0.0
        %671 = vmatpush1.msra.mxu0 0.0
        %672 = vmatprep.subr.mxu0 0.0
        %673 = vmatpush1.msra.mxu0 0.0
        %674 = vmatprep.subr.mxu0 0.0
        %675 = vmatpush1.msra.mxu0 0.0
        %676 = vmatprep.subr.mxu0 0.0
        %677 = vmatpush1.msra.mxu0 %v649
        %678 = vmatprep.subr.mxu0 0.0
        %679 = vmatpush1.msra.mxu0 %v648
        %680 = vmatprep.subr.mxu0 0.0
        %681 = vmatpush1.msra.mxu0 %v647
        %682 = vmatprep.subr.mxu0 0.0
        %683 = vmatpush1.msra.mxu0 %v646
        %684 = vmatprep.subr.mxu0 0.0
        %685 = vmatpush1.msra.mxu0 %v645
        %686 = vmatprep.subr.mxu0 0.0
        %687 = vmatpush1.msra.mxu0 %v644
        %688 = vmatprep.subr.mxu0 0.0
        %689 = vmatpush1.msra.mxu0 %v643
        %690 = vmatprep.subr.mxu0 0.0
        %691 = vmatpush1.msra.mxu0 %v642
        %692 = vmatprep.subr.mxu0 0.0
        %693 = vmatpush2.msra.mxu0 0.0
        %694 = vmatprep.subr.mxu0 0.0
        %695 = vmatpush2.msra.mxu0 0.0
        %696 = vmatprep.subr.mxu0 0.0
        %697 = vmatpush2.msra.mxu0 0.0
        %698 = vmatprep.subr.mxu0 0.0
        %699 = vmatpush2.msra.mxu0 0.0
        %700 = vmatprep.subr.mxu0 0.0
        %701 = vmatpush2.msra.mxu0 0.0
        %702 = vmatprep.subr.mxu0 0.0
        %703 = vmatpush2.msra.mxu0 0.0
        %704 = vmatprep.subr.mxu0 0.0
        %705 = vmatpush2.msra.mxu0 0.0
        %706 = vmatprep.subr.mxu0 0.0
        %707 = vmatpush2.msra.mxu0 0.0
        %708 = vmatprep.subr.mxu0 0.0
        %709 = vmatpush2.msra.mxu0 0.0
        %710 = vmatprep.subr.mxu0 0.0
        %711 = vmatpush2.msra.mxu0 0.0
        %712 = vmatprep.subr.mxu0 0.0
        %713 = vmatpush2.msra.mxu0 0.0
        %714 = vmatprep.subr.mxu0 0.0
        %715 = vmatpush2.msra.mxu0 0.0
        %716 = vmatprep.subr.mxu0 0.0
        %717 = vmatpush2.msra.mxu0 0.0
        %718 = vmatprep.subr.mxu0 0.0
        %719 = vmatpush2.msra.mxu0 0.0
        %720 = vmatprep.subr.mxu0 0.0
        %721 = vmatpush2.msra.mxu0 0.0
        %722 = vmatprep.subr.mxu0 0.0
        %723 = vmatpush2.msra.mxu0 0.0
        %724 = vmatprep.mubr.f32.mxu0 0.0
        %725 = vmatmul.mubr.f32.gmra.mxu0 %v658
        %v726 = vpop.f32.mrf.mxu0
        %v727 = vadd.f32 %v655, %v726
        %v728 = vpop.f32.mrf.mxu0
        %729 = vdwg.mxu0
        %vm730 = vcmask 15360
        %731 = vst.msk [vmem:[%s345] sm:$0xff] %vm730, %v727
        %p732 = scmp.lt.s32.totalorder %s21, 2
        %s733 = scalar_select %p732, %s21, 2
        %s734 = smul.addr %s733, 8
        %s735 = scalar_lea.vmem %s9, %s734
        // Predicated region
        $region61: #{leak_cls_dis_forward.1} parent=55 // pred_check
          %p736 = pneg %p233
        $region62: #{leak_cls_dis_forward.1} parent=55 // pred_check_branch
          %738 = sbr.rel (%p736) target = $region64
        $region63: #{leak_cls_dis_forward.1} parent=55 // pred_region
          _
        $region64: #{leak_cls_dis_forward.1} parent=55 // pred_fallthru
          _
      $region56: #{leak_cls_dis_forward.1} parent=5 // pred_fallthru
        _
      %p739 = scmp.le.s32.totalorder 2, %s16
      // Predicated region
      $region65: #{leak_cls_dis_forward.1} parent=5 // pred_check
        %p740 = pneg %p739
      $region66: #{leak_cls_dis_forward.1} parent=5 // pred_check_branch
        %742 = sbr.rel (%p740) target = $region68
      $region67: #{leak_cls_dis_forward.1} parent=5 // pred_region
        %s743 = ssub.s32 %s16, 2
        // Predicated region
        $region69: #{leak_cls_dis_forward.1} parent=67 // pred_check
          %p744 = pneg %p239
        $region70: #{leak_cls_dis_forward.1} parent=67 // pred_check_branch
          %746 = sbr.rel (%p744) target = $region72
        $region71: #{leak_cls_dis_forward.1} parent=67 // pred_region
          %p747 = scmp.lt.s32.totalorder %s22, 2
          %s748 = scalar_select %p747, %s22, 2
          %s749 = smul.addr %s748, 8
          %s750 = scalar_lea.vmem %s9, %s749
        $region72: #{leak_cls_dis_forward.1} parent=67 // pred_fallthru
          _
      $region68: #{leak_cls_dis_forward.1} parent=5 // pred_fallthru
        _
    $region6: #{leak_cls_dis_forward.1} parent=1 // loop_footer
      %s20 = sadd.s32 1, %s16
    $region7: #{leak_cls_dis_forward.1} parent=1 // loop_footer_branch
      %15 = sbr.rel target = $region3
    $region8: #{leak_cls_dis_forward.1} parent=1 // loop_exit
      _
    %751 = vsyncpa [#allocation3], 1
    %s752 = scalar_lea.sflag [#allocation3], 1
    %753 = vsyncpa %s752, 1

</llo_original>
